<compile_context>
chip_gen: v7x
topology: tpu7x:2x2x1
jax: 0.10.0
libtpu: 0.0.40
codegen_flags: <defaults>
</compile_context>

<pallas_src>
import jax
import jax.numpy as jnp
from jax.experimental import pallas as pl
from jax.experimental.pallas import tpu as pltpu


def _mlp_kernel(x_ref, w1_ref, b1_ref, w2_ref, o_ref, acc_ref):
    """Recompute variant: first matmul is redone for every output (j) tile."""
    k = pl.program_id(2)

    @pl.when(k == 0)
    def _init():
        acc_ref[...] = jnp.zeros_like(acc_ref)

    # First matmul: full-Fin contraction for this hidden slice -> pre-activation.
    h = jnp.dot(x_ref[...], w1_ref[...], preferred_element_type=jnp.float32)
    # Bias + ReLU in f32 (bias slice broadcasts over the batch rows).
    h = jnp.maximum(h + b1_ref[...].astype(jnp.float32), 0.0)

    # Second matmul: partial product over this hidden slice, accumulated in f32.
    acc_ref[...] += jnp.dot(h.astype(w2_ref.dtype), w2_ref[...],
                            preferred_element_type=jnp.float32)

    @pl.when(k == pl.num_programs(2) - 1)
    def _finish():
        o_ref[...] = acc_ref[...].astype(o_ref.dtype)


def _mlp_kernel_hcache(x_ref, w1_ref, b1_ref, w2_ref, o_ref, acc_ref, h_ref):
    """Hidden-activation-caching variant: relu(x@W1+b1) is computed once per
    batch tile (at j == 0) into h_ref and reused for all output (j) tiles."""
    j = pl.program_id(1)
    k = pl.program_id(2)
    tk = w2_ref.shape[0]
    off = pl.multiple_of(k * tk, tk)

    @pl.when(k == 0)
    def _init():
        acc_ref[...] = jnp.zeros_like(acc_ref)

    @pl.when(j == 0)
    def _first_layer():
        h = jnp.dot(x_ref[...], w1_ref[...], preferred_element_type=jnp.float32)
        h = jnp.maximum(h + b1_ref[...].astype(jnp.float32), 0.0)
        h_ref[:, pl.ds(off, tk)] = h

    h = h_ref[:, pl.ds(off, tk)]
    acc_ref[...] += jnp.dot(h.astype(w2_ref.dtype), w2_ref[...],
                            preferred_element_type=jnp.float32)

    @pl.when(k == pl.num_programs(2) - 1)
    def _finish():
        o_ref[...] = acc_ref[...].astype(o_ref.dtype)


def _round_up(x, m):
    return (x + m - 1) // m * m


def mlp_forward(x, w1, b1, w2, *, block_b=128, block_n=256, block_h=256,
                h_cache_bytes=8 * 1024 * 1024):
    """x: [B, Fin], w1: [Fin, H] (PyTorch W1.T), b1: [H], w2: [H, Fout] (W2.T) -> [B, Fout]."""
    B, Fin = x.shape
    Fin2, H = w1.shape
    H2, Fout = w2.shape
    assert Fin == Fin2 and H == H2 and b1.shape == (H,)

    itemsize = jnp.dtype(x.dtype).itemsize
    sub = 8 if itemsize >= 4 else 16  # sublane granularity (f32 vs bf16)

    # Batch (M) tile: process the whole (padded) batch in one step when small.
    tm = min(block_b, _round_up(B, sub))
    b_pad = _round_up(B, tm)

    # Output-feature (N) tile: lane-dense multiple of 128.
    tn = min(block_n, _round_up(Fout, 128))
    fout_pad = _round_up(Fout, tn)

    # Hidden (K of the second matmul) tile: lane axis of W1 / sublane axis of W2.
    tk = min(block_h, _round_up(H, 128))
    h_pad = _round_up(H, tk)

    # Lane-dense Fin so the x tile loads are unmasked.
    # TODO(synk): for very large Fin, add a Fin-reduction grid axis with a
    # pre-ReLU f32 hidden accumulator instead of loading the full Fin row.
    fin_pad = _round_up(Fin, 128)

    # Zero-pad operands (exact no-op through matmul/relu/matmul: padded W2 rows are 0).
    xp = jnp.pad(x, ((0, b_pad - B), (0, fin_pad - Fin)))
    w1p = jnp.pad(w1, ((0, fin_pad - Fin), (0, h_pad - H)))
    b1p = jnp.pad(b1, (0, h_pad - H)).reshape(1, h_pad)
    w2p = jnp.pad(w2, ((0, h_pad - H), (0, fout_pad - Fout)))

    n_j = fout_pad // tn
    grid = (b_pad // tm, n_j, h_pad // tk)

    # Cache the first-layer activation across output tiles when it (a) helps
    # (more than one j tile) and (b) fits a modest VMEM budget.
    use_cache = (n_j > 1) and (tm * h_pad * 4 <= h_cache_bytes)

    if use_cache:
        kernel = _mlp_kernel_hcache
        scratch_shapes = [pltpu.VMEM((tm, tn), jnp.float32),
                          pltpu.VMEM((tm, h_pad), jnp.float32)]
        # W1/b1 are only consumed at j == 0; pin their block to 0 for j > 0 so
        # the pipeline does not re-fetch them from HBM per output tile.
        w1_spec = pl.BlockSpec((fin_pad, tk),
                               lambda i, j, k: (0, jnp.where(j == 0, k, 0)))
        b1_spec = pl.BlockSpec((1, tk),
                               lambda i, j, k: (0, jnp.where(j == 0, k, 0)))
    else:
        kernel = _mlp_kernel
        scratch_shapes = [pltpu.VMEM((tm, tn), jnp.float32)]
        w1_spec = pl.BlockSpec((fin_pad, tk), lambda i, j, k: (0, k))
        b1_spec = pl.BlockSpec((1, tk), lambda i, j, k: (0, k))

    cost = pl.CostEstimate(
        flops=2 * B * Fin * H + 2 * B * H * Fout,
        transcendentals=0,
        bytes_accessed=(x.size + w1.size + b1.size + w2.size + B * Fout) * itemsize,
    )

    out_padded = pl.pallas_call(
        kernel,
        out_shape=jax.ShapeDtypeStruct((b_pad, fout_pad), x.dtype),
        grid=grid,
        in_specs=[
            pl.BlockSpec((tm, fin_pad), lambda i, j, k: (i, 0)),   # x row tile (full Fin)
            w1_spec,                                               # W1 hidden slice
            b1_spec,                                               # b1 hidden slice
            pl.BlockSpec((tk, tn), lambda i, j, k: (k, j)),        # W2 (hidden, out) tile
        ],
        out_specs=pl.BlockSpec((tm, tn), lambda i, j, k: (i, j)),  # resident across k
        scratch_shapes=scratch_shapes,
        compiler_params=pltpu.CompilerParams(
            dimension_semantics=("parallel", "parallel", "arbitrary"),
            vmem_limit_bytes=64 * 1024 * 1024,
        ),
        cost_estimate=cost,
    )(xp, w1p, b1p, w2p)

    return out_padded[:B, :Fout]


def reference_mlp(x, w1, b1, w2):
    h = jnp.maximum(x @ w1 + b1, 0.0)
    return h @ w2


def _rand_mlp(key, B, Fin, H, Fout, dtype=jnp.float32):
    kx, kw1, kb1, kw2 = jax.random.split(key, 4)
    x = jax.random.normal(kx, (B, Fin), dtype=dtype)
    bound1 = 1.0 / (Fin ** 0.5)
    w1 = jax.random.uniform(kw1, (Fin, H), minval=-bound1, maxval=bound1, dtype=dtype)
    b1 = jax.random.uniform(kb1, (H,), minval=-bound1, maxval=bound1, dtype=dtype)
    bound2 = 1.0 / (H ** 0.5)
    w2 = jax.random.uniform(kw2, (H, Fout), minval=-bound2, maxval=bound2, dtype=dtype)
    return x, w1, b1, w2


if __name__ == "__main__":
    key = jax.random.PRNGKey(0)
    k1, k2 = jax.random.split(key)

    # --- Case 1: toy shapes (single tile; recompute kernel path). -------------
    B, Fin, H, Fout = 16, 32, 64, 16
    x, w1, b1, w2 = _rand_mlp(k1, B, Fin, H, Fout)

    out = jax.block_until_ready(mlp_forward(x, w1, b1, w2))
    ref = reference_mlp(x, w1, b1, w2)
    assert out.shape == (B, Fout)
    assert jnp.allclose(out, ref, atol=1e-5, rtol=1e-5), "mismatch vs reference"

    # Ragged-batch path (batch not a multiple of the tile) must also be exact.
    xr = x[:10]
    out_r = jax.block_until_ready(mlp_forward(xr, w1, b1, w2))
    ref_r = reference_mlp(xr, w1, b1, w2)
    assert out_r.shape == (10, Fout)
    assert jnp.allclose(out_r, ref_r, atol=1e-5, rtol=1e-5), "ragged mismatch"

    # --- Case 2: multi-tile shapes exercising the h-cache + accumulation path. -
    B2, Fin2, H2, Fout2 = 32, 48, 320, 192
    x2, w1b, b1b, w2b = _rand_mlp(k2, B2, Fin2, H2, Fout2)
    out2 = jax.block_until_ready(
        mlp_forward(x2, w1b, b1b, w2b, block_b=16, block_n=128, block_h=128))
    ref2 = reference_mlp(x2, w1b, b1b, w2b)
    assert out2.shape == (B2, Fout2)
    assert jnp.allclose(out2, ref2, atol=1e-4, rtol=1e-4), "multi-tile mismatch"

    print("KERNEL_OK")
</pallas_src>

<mosaic_0001>
module attributes {stable_mosaic.version = 11 : i64} {
  func.func @_mlp_kernel(%arg0: i32, %arg1: i32, %arg2: i32, %arg3: memref<16x128xf32, #tpu.memory_space<vmem>>, %arg4: memref<128x128xf32, #tpu.memory_space<vmem>>, %arg5: memref<1x128xf32, #tpu.memory_space<vmem>>, %arg6: memref<128x128xf32, #tpu.memory_space<vmem>>, %arg7: memref<16x128xf32, #tpu.memory_space<vmem>>, %arg8: memref<16x128xf32, #tpu.memory_space<vmem>>) attributes {dimension_semantics = [#tpu.dimension_semantics<parallel>, #tpu.dimension_semantics<parallel>, #tpu.dimension_semantics<arbitrary>], iteration_bounds = array<i64: 1, 1, 1>, scalar_prefetch = 0 : i64, scratch_operands = 1 : i64, tpu.core_type = #tpu.core_type<tc>, window_params = [{transform_indices = @transform_0, window_bounds = array<i64: 16, 128>}, {transform_indices = @transform_1, window_bounds = array<i64: 128, 128>}, {transform_indices = @transform_2, window_bounds = array<i64: 1, 128>}, {transform_indices = @transform_3, window_bounds = array<i64: 128, 128>}, {transform_indices = @transform_4, window_bounds = array<i64: 16, 128>}]} {
    %c0_i32 = arith.constant 0 : i32
    %0 = arith.cmpi eq, %arg2, %c0_i32 : i32
    %1 = arith.extui %0 : i1 to i32
    %c0_i32_0 = arith.constant 0 : i32
    %2 = arith.cmpi ne, %1, %c0_i32_0 : i32
    scf.if %2 {
      %cst_16 = arith.constant 0.000000e+00 : f32
      %19 = vector.broadcast %cst_16 : f32 to vector<16x128xf32>
      %c0_17 = arith.constant 0 : index
      %c0_18 = arith.constant 0 : index
      %20 = vector.load %arg8[%c0_17, %c0_18] : memref<16x128xf32, #tpu.memory_space<vmem>>, vector<16x128xf32>
      tpu.vector_store %arg8[%c0_17, %c0_18], %19 {strides = array<i32>} : memref<16x128xf32, #tpu.memory_space<vmem>>, vector<16x128xf32>,
    } else {
    }
    %c0 = arith.constant 0 : index
    %c0_1 = arith.constant 0 : index
    %3 = vector.load %arg3[%c0, %c0_1] : memref<16x128xf32, #tpu.memory_space<vmem>>, vector<16x128xf32>
    %c0_2 = arith.constant 0 : index
    %c0_3 = arith.constant 0 : index
    %4 = vector.load %arg4[%c0_2, %c0_3] : memref<128x128xf32, #tpu.memory_space<vmem>>, vector<128x128xf32>
    %cst = arith.constant dense<0.000000e+00> : vector<16x128xf32>
    %5 = tpu.matmul %3, %4, %cst {dimension_numbers = #tpu.dot_dimension_numbers<[1], [0], [0], [1], [0, 0, 1, 1], [], []>} : vector<16x128xf32>, vector<128x128xf32>, vector<16x128xf32> -> vector<16x128xf32>
    %c0_4 = arith.constant 0 : index
    %c0_5 = arith.constant 0 : index
    %6 = vector.load %arg5[%c0_4, %c0_5] : memref<1x128xf32, #tpu.memory_space<vmem>>, vector<1x128xf32>
    %7 = vector.broadcast %6 : vector<1x128xf32> to vector<16x128xf32>
    %8 = arith.addf %5, %7 : vector<16x128xf32>
    %cst_6 = arith.constant 0.000000e+00 : f32
    %9 = vector.broadcast %cst_6 : f32 to vector<16x128xf32>
    %10 = arith.maximumf %8, %9 : vector<16x128xf32>
    %c0_7 = arith.constant 0 : index
    %c0_8 = arith.constant 0 : index
    %11 = vector.load %arg8[%c0_7, %c0_8] : memref<16x128xf32, #tpu.memory_space<vmem>>, vector<16x128xf32>
    %c0_9 = arith.constant 0 : index
    %c0_10 = arith.constant 0 : index
    %12 = vector.load %arg6[%c0_9, %c0_10] : memref<128x128xf32, #tpu.memory_space<vmem>>, vector<128x128xf32>
    %cst_11 = arith.constant dense<0.000000e+00> : vector<16x128xf32>
    %13 = tpu.matmul %10, %12, %cst_11 {dimension_numbers = #tpu.dot_dimension_numbers<[1], [0], [0], [1], [0, 0, 1, 1], [], []>} : vector<16x128xf32>, vector<128x128xf32>, vector<16x128xf32> -> vector<16x128xf32>
    %14 = arith.addf %11, %13 : vector<16x128xf32>
    %c0_12 = arith.constant 0 : index
    %c0_13 = arith.constant 0 : index
    %15 = vector.load %arg8[%c0_12, %c0_13] : memref<16x128xf32, #tpu.memory_space<vmem>>, vector<16x128xf32>
    tpu.vector_store %arg8[%c0_12, %c0_13], %14 {strides = array<i32>} : memref<16x128xf32, #tpu.memory_space<vmem>>, vector<16x128xf32>,
    %c0_i32_14 = arith.constant 0 : i32
    %16 = arith.cmpi eq, %arg2, %c0_i32_14 : i32
    %17 = arith.extui %16 : i1 to i32
    %c0_i32_15 = arith.constant 0 : i32
    %18 = arith.cmpi ne, %17, %c0_i32_15 : i32
    scf.if %18 {
      %c0_16 = arith.constant 0 : index
      %c0_17 = arith.constant 0 : index
      %19 = vector.load %arg8[%c0_16, %c0_17] : memref<16x128xf32, #tpu.memory_space<vmem>>, vector<16x128xf32>
      %c0_18 = arith.constant 0 : index
      %c0_19 = arith.constant 0 : index
      %20 = vector.load %arg7[%c0_18, %c0_19] : memref<16x128xf32, #tpu.memory_space<vmem>>, vector<16x128xf32>
      tpu.vector_store %arg7[%c0_18, %c0_19], %19 {strides = array<i32>} : memref<16x128xf32, #tpu.memory_space<vmem>>, vector<16x128xf32>,
    } else {
    }
    return
  }
  func.func @transform_0(%arg0: i32, %arg1: i32, %arg2: i32) -> (i32, i32) {
    %c0_i32 = arith.constant 0 : i32
    %c0_i32_0 = arith.constant 0 : i32
    return %arg0, %c0_i32 : i32, i32
  }
  func.func @transform_1(%arg0: i32, %arg1: i32, %arg2: i32) -> (i32, i32) {
    %c0_i32 = arith.constant 0 : i32
    %c0_i32_0 = arith.constant 0 : i32
    return %c0_i32, %arg2 : i32, i32
  }
  func.func @transform_2(%arg0: i32, %arg1: i32, %arg2: i32) -> (i32, i32) {
    %c0_i32 = arith.constant 0 : i32
    %c0_i32_0 = arith.constant 0 : i32
    return %c0_i32, %arg2 : i32, i32
  }
  func.func @transform_3(%arg0: i32, %arg1: i32, %arg2: i32) -> (i32, i32) {
    %c0_i32 = arith.constant 0 : i32
    return %arg2, %arg1 : i32, i32
  }
  func.func @transform_4(%arg0: i32, %arg1: i32, %arg2: i32) -> (i32, i32) {
    %c0_i32 = arith.constant 0 : i32
    return %arg0, %arg1 : i32, i32
  }
}

</mosaic_0001>

<llo_original>
// kernel: tpu_custom_call.1
$region0: #{tpu_custom_call.1}
  #allocation0 [shape = 'u32[]', space=smem, size = 0x4, offset = 0x4, fixed_abs, tag = 'smem constant byte address 0x4 - core index']
  #allocation1 [shape = 'u32[144,128]{1,0:T(1,128)}', space=vmem, size = 0x12000, scoped, tag = 'internal scratch']
  #allocation2 [shape = 'f32[16,128]{1,0:T(8,128)}', space=vmem, size = 0x2000, scoped, tag = 'scratch operand']
  %s0 = inlined_call_operand.hbm [shape: f32[16,128], index: 0, kind: input, shape index: {}]
  %s1 = inlined_call_operand.hbm [shape: f32[128,128], index: 1, kind: input, shape index: {}]
  %s2 = inlined_call_operand.hbm [shape: f32[1,128], index: 2, kind: input, shape index: {}]
  %s3 = inlined_call_operand.hbm [shape: f32[128,128], index: 3, kind: input, shape index: {}]
  %s4 = inlined_call_operand.hbm [shape: f32[16,128], index: 4, kind: output, shape index: {}]
  %s5 = sld [smem:[#allocation0]]
  $region50: #{tpu_custom_call.1} parent=0
    _
  %s7 = ssub.s32 1, %s5
  %s8 = scalar_select 0, %s7, %s5
  $region1: #{tpu_custom_call.1} parent=0
    #allocation3 [shape = 'u8[8192]{0}', space=vmem, size = 0x2000, scoped, tag = 'input window, operand 0, single buffered']
    #allocation4 [shape = 's32[1]{0}', space=sflag, size = 0x4, scoped, tag = 'scoped memory for tpu_custom_call.1']
    #allocation5 [shape = 's32[1]{0}', space=sflag, size = 0x4, scoped, tag = 'scoped memory for tpu_custom_call.1']
    #allocation6 [shape = 'u8[65536]{0}', space=vmem, size = 0x10000, scoped, tag = 'input window, operand 1, single buffered']
    #allocation7 [shape = 's32[1]{0}', space=sflag, size = 0x4, scoped, tag = 'scoped memory for tpu_custom_call.1']
    #allocation8 [shape = 'u8[512]{0}', space=vmem, size = 0x400, scoped, tag = 'input window, operand 2, single buffered']
    #allocation9 [shape = 'u8[65536]{0}', space=vmem, size = 0x10000, scoped, tag = 'input window, operand 3, single buffered']
    #allocation10 [shape = 's32[1]{0}', space=sflag, size = 0x4, scoped, tag = 'scoped memory for tpu_custom_call.1']
    #allocation11 [shape = 'u8[8192]{0}', space=vmem, size = 0x2000, scoped, tag = 'output window, operand 0, single buffered']
    %9 = vsyncpa [#allocation4], 0
    %10 = vsyncpa [#allocation7], 0
    %11 = vsyncpa [#allocation10], 0
    %12 = vsyncpa [#allocation5], 0
    // Predicated region
    $region2: #{tpu_custom_call.1} parent=1 // pred_check
      _
    $region3: #{tpu_custom_call.1} parent=1 // pred_check_branch
      %14 = sbr.rel (0) target = $region5
    $region4: #{tpu_custom_call.1} parent=1 // pred_region
      %s16 = ssub.s32 256, 256
      %17 = vsyncadd [#allocation4], %s16
      %s18 = sshll.u32 [#allocation3], 4
      %s19 = int_to_ptr.vmem [resolvable:$true] %s18
      %24 = dma.hbm_to_vmem [thread:$0]  %s0, 256, %s19, [#allocation4], 128, 128, 8
    $region5: #{tpu_custom_call.1} parent=1 // pred_fallthru
      _
    // Predicated region
    $region6: #{tpu_custom_call.1} parent=1 // pred_check
      _
    $region7: #{tpu_custom_call.1} parent=1 // pred_check_branch
      %26 = sbr.rel (0) target = $region9
    $region8: #{tpu_custom_call.1} parent=1 // pred_region
      %s28 = ssub.s32 2048, 2048
      %29 = vsyncadd [#allocation7], %s28
      %s30 = sshll.u32 [#allocation6], 4
      %s31 = int_to_ptr.vmem [resolvable:$true] %s30
      %36 = dma.hbm_to_vmem [thread:$0]  %s1, 2048, %s31, [#allocation7], 128, 128, 8
    $region9: #{tpu_custom_call.1} parent=1 // pred_fallthru
      _
    // Predicated region
    $region10: #{tpu_custom_call.1} parent=1 // pred_check
      _
    $region11: #{tpu_custom_call.1} parent=1 // pred_check_branch
      %38 = sbr.rel (0) target = $region13
    $region12: #{tpu_custom_call.1} parent=1 // pred_region
      %s40 = ssub.s32 16, 16
      %41 = vsyncadd [#allocation7], %s40
      %s43 = sshll.u32 [#allocation8], 4
      %s44 = int_to_ptr.vmem [resolvable:$true] %s43
      %46 = dma.hbm_to_vmem [thread:$0]  %s2, 16, %s44, [#allocation7]
    $region13: #{tpu_custom_call.1} parent=1 // pred_fallthru
      _
    // Predicated region
    $region14: #{tpu_custom_call.1} parent=1 // pred_check
      _
    $region15: #{tpu_custom_call.1} parent=1 // pred_check_branch
      %48 = sbr.rel (0) target = $region17
    $region16: #{tpu_custom_call.1} parent=1 // pred_region
      %s50 = ssub.s32 2048, 2048
      %51 = vsyncadd [#allocation10], %s50
      %s52 = sshll.u32 [#allocation9], 4
      %s53 = int_to_ptr.vmem [resolvable:$true] %s52
      %58 = dma.hbm_to_vmem [thread:$0]  %s3, 2048, %s53, [#allocation10], 128, 128, 8
    $region17: #{tpu_custom_call.1} parent=1 // pred_fallthru
      _
    // Predicated region
    $region18: #{tpu_custom_call.1} parent=1 // pred_check
      _
    $region19: #{tpu_custom_call.1} parent=1 // pred_check_branch
      %60 = sbr.rel (0) target = $region21
    $region20: #{tpu_custom_call.1} parent=1 // pred_region
      %61 = dma.done [#allocation4], 256
    $region21: #{tpu_custom_call.1} parent=1 // pred_fallthru
      _
    // Predicated region
    $region22: #{tpu_custom_call.1} parent=1 // pred_check
      _
    $region23: #{tpu_custom_call.1} parent=1 // pred_check_branch
      %63 = sbr.rel (0) target = $region25
    $region24: #{tpu_custom_call.1} parent=1 // pred_region
      %64 = dma.done [#allocation7], 2048
    $region25: #{tpu_custom_call.1} parent=1 // pred_fallthru
      _
    // Predicated region
    $region26: #{tpu_custom_call.1} parent=1 // pred_check
      _
    $region27: #{tpu_custom_call.1} parent=1 // pred_check_branch
      %66 = sbr.rel (0) target = $region29
    $region28: #{tpu_custom_call.1} parent=1 // pred_region
      %67 = dma.done [#allocation7], 16
    $region29: #{tpu_custom_call.1} parent=1 // pred_fallthru
      _
    // Predicated region
    $region30: #{tpu_custom_call.1} parent=1 // pred_check
      _
    $region31: #{tpu_custom_call.1} parent=1 // pred_check_branch
      %69 = sbr.rel (0) target = $region33
    $region32: #{tpu_custom_call.1} parent=1 // pred_region
      %70 = dma.done [#allocation10], 2048
    $region33: #{tpu_custom_call.1} parent=1 // pred_fallthru
      _
    %p71 = scmp.eq.s32.totalorder 0, 0
    // Predicated region
    $region34: #{tpu_custom_call.1} parent=1 // pred_check
      %p72 = pneg %p71
    $region35: #{tpu_custom_call.1} parent=1 // pred_check_branch
      %74 = sbr.rel (%p72) target = $region37
    $region36: #{tpu_custom_call.1} parent=1 // pred_region
      %75 = vst [vmem:[#allocation2] sm:$0xff] 0.0
      %76 = vst [vmem:[#allocation2 + $0x8] sm:$0xff] 0.0
    $region37: #{tpu_custom_call.1} parent=1 // pred_fallthru
      _
    %v77 = vld [vmem:[#allocation3] sm:$0xff]
    %v78 = vld [vmem:[#allocation3 + $0x8] sm:$0xff]
    %v79 = vld [vmem:[#allocation6] sm:$0xff]
    %v80 = vld [vmem:[#allocation6 + $0x8] sm:$0xff]
    %v81 = vld [vmem:[#allocation6 + $0x10] sm:$0xff]
    %v82 = vld [vmem:[#allocation6 + $0x18] sm:$0xff]
    %v83 = vld [vmem:[#allocation6 + $0x20] sm:$0xff]
    %v84 = vld [vmem:[#allocation6 + $0x28] sm:$0xff]
    %v85 = vld [vmem:[#allocation6 + $0x30] sm:$0xff]
    %v86 = vld [vmem:[#allocation6 + $0x38] sm:$0xff]
    %v87 = vld [vmem:[#allocation6 + $0x40] sm:$0xff]
    %v88 = vld [vmem:[#allocation6 + $0x48] sm:$0xff]
    %v89 = vld [vmem:[#allocation6 + $0x50] sm:$0xff]
    %v90 = vld [vmem:[#allocation6 + $0x58] sm:$0xff]
    %v91 = vld [vmem:[#allocation6 + $0x60] sm:$0xff]
    %v92 = vld [vmem:[#allocation6 + $0x68] sm:$0xff]
    %v93 = vld [vmem:[#allocation6 + $0x70] sm:$0xff]
    %v94 = vld [vmem:[#allocation6 + $0x78] sm:$0xff]
    %v95 = vld [vmem:[#allocation8] sm:$0x1]
    %v97 = vlaneseq
    %v98 = vshrl.u32 %v97, 7
    %v99 = vsub.s32 0, %v98
    %v100 = vrot.slane %v95, %v99
    %102 = vmatprep.subr.mxu0 0.0
    %103 = vmatpush1.msra.mxu0 %v79
    %104 = vmatprep.subr.mxu0 0.0
    %105 = vmatpush1.msra.mxu0 %v80
    %106 = vmatprep.subr.mxu0 0.0
    %107 = vmatpush1.msra.mxu0 %v81
    %108 = vmatprep.subr.mxu0 0.0
    %109 = vmatpush1.msra.mxu0 %v82
    %110 = vmatprep.subr.mxu0 0.0
    %111 = vmatpush1.msra.mxu0 %v83
    %112 = vmatprep.subr.mxu0 0.0
    %113 = vmatpush1.msra.mxu0 %v84
    %114 = vmatprep.subr.mxu0 0.0
    %115 = vmatpush1.msra.mxu0 %v85
    %116 = vmatprep.subr.mxu0 0.0
    %117 = vmatpush1.msra.mxu0 %v86
    %118 = vmatprep.subr.mxu0 0.0
    %119 = vmatpush1.msra.mxu0 %v87
    %120 = vmatprep.subr.mxu0 0.0
    %121 = vmatpush1.msra.mxu0 %v88
    %122 = vmatprep.subr.mxu0 0.0
    %123 = vmatpush1.msra.mxu0 %v89
    %124 = vmatprep.subr.mxu0 0.0
    %125 = vmatpush1.msra.mxu0 %v90
    %126 = vmatprep.subr.mxu0 0.0
    %127 = vmatpush1.msra.mxu0 %v91
    %128 = vmatprep.subr.mxu0 0.0
    %129 = vmatpush1.msra.mxu0 %v92
    %130 = vmatprep.subr.mxu0 0.0
    %131 = vmatpush1.msra.mxu0 %v93
    %132 = vmatprep.subr.mxu0 0.0
    %133 = vmatpush1.msra.mxu0 %v94
    %134 = vmatprep.subr.mxu0 0.0
    %135 = vmatpush1.msra.mxu0 0.0
    %136 = vmatprep.subr.mxu0 0.0
    %137 = vmatpush1.msra.mxu0 0.0
    %138 = vmatprep.subr.mxu0 0.0
    %139 = vmatpush1.msra.mxu0 0.0
    %140 = vmatprep.subr.mxu0 0.0
    %141 = vmatpush1.msra.mxu0 0.0
    %142 = vmatprep.subr.mxu0 0.0
    %143 = vmatpush1.msra.mxu0 0.0
    %144 = vmatprep.subr.mxu0 0.0
    %145 = vmatpush1.msra.mxu0 0.0
    %146 = vmatprep.subr.mxu0 0.0
    %147 = vmatpush1.msra.mxu0 0.0
    %148 = vmatprep.subr.mxu0 0.0
    %149 = vmatpush1.msra.mxu0 0.0
    %150 = vmatprep.subr.mxu0 0.0
    %151 = vmatpush1.msra.mxu0 0.0
    %152 = vmatprep.subr.mxu0 0.0
    %153 = vmatpush1.msra.mxu0 0.0
    %154 = vmatprep.subr.mxu0 0.0
    %155 = vmatpush1.msra.mxu0 0.0
    %156 = vmatprep.subr.mxu0 0.0
    %157 = vmatpush1.msra.mxu0 0.0
    %158 = vmatprep.subr.mxu0 0.0
    %159 = vmatpush1.msra.mxu0 0.0
    %160 = vmatprep.subr.mxu0 0.0
    %161 = vmatpush1.msra.mxu0 0.0
    %162 = vmatprep.subr.mxu0 0.0
    %163 = vmatpush1.msra.mxu0 0.0
    %164 = vmatprep.subr.mxu0 0.0
    %165 = vmatpush1.msra.mxu0 0.0
    %166 = vmatprep.mubr.f32.mxu0 0.0
    %167 = vmatmul.mubr.f32.gmra.mrb[0].mxu0 %v77
    %v168 = vpop.f32.mrb[0].mxu0
    %v169 = vadd.f32 %v100, %v168
    %v170 = vpop.f32.mrb[0].mxu0
    %171 = vmatprep.mubr.f32.mxu0 0.0
    %172 = vmatmul.mubr.f32.gmra.mrb[0].mxu0 %v78
    %v173 = vpop.f32.mrb[0].mxu0
    %v174 = vadd.f32 %v100, %v173
    %v175 = vpop.f32.mrb[0].mxu0
    %176 = vdwg.mxu0
    %v177 = vmax.f32 %v169, 0.0
    %v178 = vmax.f32 %v174, 0.0
    %v179 = vld [vmem:[#allocation2] sm:$0xff]
    %v180 = vld [vmem:[#allocation2 + $0x8] sm:$0xff]
    %v181 = vld [vmem:[#allocation9] sm:$0xff]
    %v182 = vld [vmem:[#allocation9 + $0x8] sm:$0xff]
    %v183 = vld [vmem:[#allocation9 + $0x10] sm:$0xff]
    %v184 = vld [vmem:[#allocation9 + $0x18] sm:$0xff]
    %v185 = vld [vmem:[#allocation9 + $0x20] sm:$0xff]
    %v186 = vld [vmem:[#allocation9 + $0x28] sm:$0xff]
    %v187 = vld [vmem:[#allocation9 + $0x30] sm:$0xff]
    %v188 = vld [vmem:[#allocation9 + $0x38] sm:$0xff]
    %v189 = vld [vmem:[#allocation9 + $0x40] sm:$0xff]
    %v190 = vld [vmem:[#allocation9 + $0x48] sm:$0xff]
    %v191 = vld [vmem:[#allocation9 + $0x50] sm:$0xff]
    %v192 = vld [vmem:[#allocation9 + $0x58] sm:$0xff]
    %v193 = vld [vmem:[#allocation9 + $0x60] sm:$0xff]
    %v194 = vld [vmem:[#allocation9 + $0x68] sm:$0xff]
    %v195 = vld [vmem:[#allocation9 + $0x70] sm:$0xff]
    %v196 = vld [vmem:[#allocation9 + $0x78] sm:$0xff]
    %197 = vmatprep.subr.mxu0 0.0
    %198 = vmatpush1.msra.mxu0 %v181
    %199 = vmatprep.subr.mxu0 0.0
    %200 = vmatpush1.msra.mxu0 %v182
    %201 = vmatprep.subr.mxu0 0.0
    %202 = vmatpush1.msra.mxu0 %v183
    %203 = vmatprep.subr.mxu0 0.0
    %204 = vmatpush1.msra.mxu0 %v184
    %205 = vmatprep.subr.mxu0 0.0
    %206 = vmatpush1.msra.mxu0 %v185
    %207 = vmatprep.subr.mxu0 0.0
    %208 = vmatpush1.msra.mxu0 %v186
    %209 = vmatprep.subr.mxu0 0.0
    %210 = vmatpush1.msra.mxu0 %v187
    %211 = vmatprep.subr.mxu0 0.0
    %212 = vmatpush1.msra.mxu0 %v188
    %213 = vmatprep.subr.mxu0 0.0
    %214 = vmatpush1.msra.mxu0 %v189
    %215 = vmatprep.subr.mxu0 0.0
    %216 = vmatpush1.msra.mxu0 %v190
    %217 = vmatprep.subr.mxu0 0.0
    %218 = vmatpush1.msra.mxu0 %v191
    %219 = vmatprep.subr.mxu0 0.0
    %220 = vmatpush1.msra.mxu0 %v192
    %221 = vmatprep.subr.mxu0 0.0
    %222 = vmatpush1.msra.mxu0 %v193
    %223 = vmatprep.subr.mxu0 0.0
    %224 = vmatpush1.msra.mxu0 %v194
    %225 = vmatprep.subr.mxu0 0.0
    %226 = vmatpush1.msra.mxu0 %v195
    %227 = vmatprep.subr.mxu0 0.0
    %228 = vmatpush1.msra.mxu0 %v196
    %229 = vmatprep.subr.mxu0 0.0
    %230 = vmatpush1.msra.mxu0 0.0
    %231 = vmatprep.subr.mxu0 0.0
    %232 = vmatpush1.msra.mxu0 0.0
    %233 = vmatprep.subr.mxu0 0.0
    %234 = vmatpush1.msra.mxu0 0.0
    %235 = vmatprep.subr.mxu0 0.0
    %236 = vmatpush1.msra.mxu0 0.0
    %237 = vmatprep.subr.mxu0 0.0
    %238 = vmatpush1.msra.mxu0 0.0
    %239 = vmatprep.subr.mxu0 0.0
    %240 = vmatpush1.msra.mxu0 0.0
    %241 = vmatprep.subr.mxu0 0.0
    %242 = vmatpush1.msra.mxu0 0.0
    %243 = vmatprep.subr.mxu0 0.0
    %244 = vmatpush1.msra.mxu0 0.0
    %245 = vmatprep.subr.mxu0 0.0
    %246 = vmatpush1.msra.mxu0 0.0
    %247 = vmatprep.subr.mxu0 0.0
    %248 = vmatpush1.msra.mxu0 0.0
    %249 = vmatprep.subr.mxu0 0.0
    %250 = vmatpush1.msra.mxu0 0.0
    %251 = vmatprep.subr.mxu0 0.0
    %252 = vmatpush1.msra.mxu0 0.0
    %253 = vmatprep.subr.mxu0 0.0
    %254 = vmatpush1.msra.mxu0 0.0
    %255 = vmatprep.subr.mxu0 0.0
    %256 = vmatpush1.msra.mxu0 0.0
    %257 = vmatprep.subr.mxu0 0.0
    %258 = vmatpush1.msra.mxu0 0.0
    %259 = vmatprep.subr.mxu0 0.0
    %260 = vmatpush1.msra.mxu0 0.0
    %261 = vmatprep.mubr.f32.mxu0 0.0
    %262 = vmatmul.mubr.f32.gmra.mrb[0].mxu0 %v177
    %v263 = vpop.f32.mrb[0].mxu0
    %v264 = vadd.f32 0.0, %v263
    %v265 = vpop.f32.mrb[0].mxu0
    %266 = vmatprep.mubr.f32.mxu0 0.0
    %267 = vmatmul.mubr.f32.gmra.mrb[0].mxu0 %v178
    %v268 = vpop.f32.mrb[0].mxu0
    %v269 = vadd.f32 0.0, %v268
    %v270 = vpop.f32.mrb[0].mxu0
    %271 = vdwg.mxu0
    %v272 = vadd.f32 %v179, %v264
    %v273 = vadd.f32 %v180, %v269
    %274 = vst [vmem:[#allocation2] sm:$0xff] %v272
    %275 = vst [vmem:[#allocation2 + $0x8] sm:$0xff] %v273
    // Predicated region
    $region38: #{tpu_custom_call.1} parent=1 // pred_check
      %p276 = pneg %p71
    $region39: #{tpu_custom_call.1} parent=1 // pred_check_branch
      %278 = sbr.rel (%p276) target = $region41
    $region40: #{tpu_custom_call.1} parent=1 // pred_region
      %v279 = vld [vmem:[#allocation2] sm:$0xff]
      %v280 = vld [vmem:[#allocation2 + $0x8] sm:$0xff]
      %281 = vst [vmem:[#allocation11] sm:$0xff] %v279
      %282 = vst [vmem:[#allocation11 + $0x8] sm:$0xff] %v280
    $region41: #{tpu_custom_call.1} parent=1 // pred_fallthru
      _
    // Predicated region
    $region42: #{tpu_custom_call.1} parent=1 // pred_check
      _
    $region43: #{tpu_custom_call.1} parent=1 // pred_check_branch
      %284 = sbr.rel (0) target = $region45
    $region44: #{tpu_custom_call.1} parent=1 // pred_region
      %s286 = ssub.s32 256, 256
      %287 = vsyncadd [#allocation5], %s286
      %s288 = sshll.u32 [#allocation11], 4
      %s289 = int_to_ptr.vmem [resolvable:$true] %s288
      %294 = dma.vmem_to_hbm [thread:$0]  %s289, 256, %s4, [#allocation5], 128, 128, 8
    $region45: #{tpu_custom_call.1} parent=1 // pred_fallthru
      _
    // Predicated region
    $region46: #{tpu_custom_call.1} parent=1 // pred_check
      _
    $region47: #{tpu_custom_call.1} parent=1 // pred_check_branch
      %296 = sbr.rel (0) target = $region49
    $region48: #{tpu_custom_call.1} parent=1 // pred_region
      %297 = dma.done [#allocation5], 256
    $region49: #{tpu_custom_call.1} parent=1 // pred_fallthru
      _
    %298 = vsyncpa [#allocation4], 1
    %299 = vsyncpa [#allocation7], 1
    %300 = vsyncpa [#allocation10], 1
    %301 = vsyncpa [#allocation5], 1

</llo_original>
